<compile_context>
chip_gen: v7x
topology: tpu7x:2x2x1
jax: 0.10.0
libtpu: 0.0.40
codegen_flags: <defaults>
</compile_context>

<pallas_src>
import functools

import jax
import jax.numpy as jnp
from jax.experimental import pallas as pl
from jax.experimental.pallas import tpu as pltpu


# ---------------------------------------------------------------------------
# Kernels
# ---------------------------------------------------------------------------

def _row_sum_kernel(x_ref, xhat_ref, o_ref, *, use_abs):
    """Per-row partial sums of (x - x_hat)^2 or |x - x_hat|.

    x_ref / xhat_ref: (tile_b, tile_f) VMEM blocks.
    o_ref:            (1, tile_b, 1) output block; revisited (resident) across
                      the innermost feature-reduction axis -> accumulator.
    """
    k = pl.program_id(2)
    d = x_ref[...].astype(jnp.float32) - xhat_ref[...].astype(jnp.float32)
    e = jnp.abs(d) if use_abs else d * d
    partial = jnp.sum(e, axis=-1, keepdims=True)[None]  # (1, tile_b, 1)

    @pl.when(k == 0)
    def _():
        o_ref[...] = partial

    @pl.when(k != 0)
    def _():
        o_ref[...] = o_ref[...] + partial


def _channel_mean_kernel(x_ref, xhat_ref, o_ref, *, use_abs, scale):
    """Channel reduction with lane-dense loads AND stores.

    x_ref / xhat_ref: (tile_b, C, tile_hw) VMEM blocks (H*W on lanes).
    o_ref:            (tile_b, tile_hw)   -- no padded singleton sublane dim.
    `scale` folds 1/C (and 2/numel for grad mode) into one per-output multiply.
    """
    d = x_ref[...].astype(jnp.float32) - xhat_ref[...].astype(jnp.float32)
    e = jnp.abs(d) if use_abs else d * d
    o_ref[...] = jnp.sum(e, axis=1) * scale


# ---------------------------------------------------------------------------
# Tiling helpers
# ---------------------------------------------------------------------------

def _round_up(x, m):
    return ((x + m - 1) // m) * m


def _sublane_unit(dtype):
    """Native sublane packing: 8 (32-bit), 16 (bf16/f16), 32 (8-bit)."""
    return max(8, 32 // max(1, int(jnp.dtype(dtype).itemsize)))


def _largest_tile(dim, unit, max_elems):
    """Largest multiple of `unit` that divides `dim` and is <= max_elems.

    Falls back to the full dimension (block == full-array exception) when
    `dim` is not a multiple of `unit`.
    """
    if dim % unit != 0:
        return dim
    t = (min(dim, max(unit, max_elems)) // unit) * unit
    while t > unit:
        if dim % t == 0:
            return t
        t -= unit
    return unit


def _smallest_divisor_ge2(n):
    for d in range(2, int(n ** 0.5) + 1):
        if n % d == 0:
            return d
    return n


def _hw_budgets():
    """(per-input block byte budget, base scoped-VMEM limit).

    128-MiB-VMEM chips (v5e/v6e): 8 MiB blocks, 64 MiB scoped limit.
    64-MiB-VMEM chips (v7x) or unknown: 4 MiB blocks, 32 MiB scoped limit
    (2 inputs x 2 pipeline buffers stays well inside the ceiling).
    """
    budget, vmem_limit = 4 << 20, 32 << 20
    try:
        cap = getattr(pltpu.get_tpu_info(), "vmem_capacity_bytes", None)
        if cap is not None and cap >= (100 << 20):
            budget, vmem_limit = 8 << 20, 64 << 20
    except Exception:
        pass
    return budget, vmem_limit


# ---------------------------------------------------------------------------
# Public wrapper (forward of AELoss)
# ---------------------------------------------------------------------------

def ae_loss(net_in, net_out, anomaly_score=False, keepdim=False, grad_score=False):
    """JAX/Pallas equivalent of AELoss(grad_score).forward(net_in, net_out, ...)."""
    x_hat = net_out["x_hat"]
    B, C, H, W = net_in.shape
    F = C * H * W
    numel = B * F
    itemsize = int(jnp.dtype(net_in.dtype).itemsize)
    unit_b = _sublane_unit(net_in.dtype)
    budget, base_vmem = _hw_budgets()
    use_abs = bool(anomaly_score and grad_score)   # grad of mean loss = 2*d/numel

    # ---------------- keepdim path: mean over channel dim, shape (B,1,H,W) ---
    if anomaly_score and keepdim:
        HW = H * W
        x3 = net_in.reshape(B, C, HW)
        xh3 = x_hat.reshape(B, C, HW)
        padded_c = _round_up(C, unit_b)            # sublane padding of the C axis

        # lane-dense tile_hw first (budgeted against the PADDED footprint),
        # then grow tile_b with the remaining budget.
        tile_b_min = 8 if B % 8 == 0 else B        # output sublane constraint (f32)
        max_hw = max(128, budget // max(1, tile_b_min * padded_c * itemsize))
        tile_hw = _largest_tile(HW, 128, max_hw)
        max_b = max(tile_b_min,
                    budget // max(1, padded_c * _round_up(tile_hw, 128) * itemsize))
        tile_b = _largest_tile(B, 8, max_b) if B % 8 == 0 else B

        # Give both v7x TensorCores work if the grid would collapse to 1 step.
        if (B // tile_b) * (HW // tile_hw) == 1:
            if tile_hw == HW and HW % 256 == 0:
                tile_hw //= 2
            elif tile_b == B and B % 16 == 0:
                tile_b //= 2

        scale = (2.0 / (numel * C)) if use_abs else (1.0 / C)
        grid = (B // tile_b, HW // tile_hw)

        in_block = tile_b * padded_c * _round_up(tile_hw, 128) * itemsize
        out_block = _round_up(tile_b, 8) * _round_up(tile_hw, 128) * 4
        vmem_limit = max(base_vmem, 4 * in_block + 2 * out_block + (2 << 20))

        kern = functools.partial(_channel_mean_kernel, use_abs=use_abs, scale=scale)
        out = pl.pallas_call(
            kern,
            grid=grid,
            in_specs=[
                pl.BlockSpec((tile_b, C, tile_hw), lambda b, j: (b, 0, j)),
                pl.BlockSpec((tile_b, C, tile_hw), lambda b, j: (b, 0, j)),
            ],
            out_specs=pl.BlockSpec((tile_b, tile_hw), lambda b, j: (b, j)),
            out_shape=jax.ShapeDtypeStruct((B, HW), jnp.float32),
            compiler_params=pltpu.CompilerParams(
                dimension_semantics=("parallel", "parallel"),
                vmem_limit_bytes=vmem_limit,
            ),
            cost_estimate=pl.CostEstimate(
                flops=3 * numel,
                transcendentals=0,
                bytes_accessed=2 * numel * itemsize + B * HW * 4,
            ),
        )(x3, xh3)
        return out.reshape(B, 1, H, W)

    # ---------------- row-sum path: loss.mean() and per-sample mean ----------
    x2 = net_in.reshape(B, F)
    xh2 = x_hat.reshape(B, F)

    # Joint (tile_b, tile_f) selection under one per-block byte budget,
    # preferring full rows (tile_f == F) so the reduction axis collapses.
    if B % unit_b == 0:
        max_b = max(unit_b, budget // max(1, F * itemsize))
        tile_b = _largest_tile(B, unit_b, max_b)
    else:
        tile_b = B
    max_f = max(128, budget // max(1, tile_b * itemsize))
    tile_f = _largest_tile(F, 128, max_f)

    n_b = B // tile_b
    n_steps = F // tile_f
    n_outer, n_k = 1, n_steps

    # Guarantee >=2 "parallel" grid steps so both v7x TensorCores get work.
    if n_b == 1:
        if n_steps > 1:
            n_outer = _smallest_divisor_ge2(n_steps)
            n_k = n_steps // n_outer
        elif B % (2 * unit_b) == 0:
            tile_b = B // 2
            n_b = 2
        elif tile_f == F and F % 256 == 0:
            tile_f = F // 2
            n_outer, n_k = 2, 1

    grid = (n_b, n_outer, n_k)
    in_block = _round_up(tile_b, unit_b) * _round_up(tile_f, 128) * itemsize
    vmem_limit = max(base_vmem, 4 * in_block + (2 << 20))

    in_map = lambda b, j, k, _nk=n_k: (b, j * _nk + k)
    kern = functools.partial(_row_sum_kernel, use_abs=use_abs)
    partials = pl.pallas_call(
        kern,
        grid=grid,
        in_specs=[
            pl.BlockSpec((tile_b, tile_f), in_map),
            pl.BlockSpec((tile_b, tile_f), in_map),
        ],
        out_specs=pl.BlockSpec((1, tile_b, 1), lambda b, j, k: (j, b, 0)),
        out_shape=jax.ShapeDtypeStruct((n_outer, B, 1), jnp.float32),
        compiler_params=pltpu.CompilerParams(
            dimension_semantics=("parallel", "parallel", "arbitrary"),
            vmem_limit_bytes=vmem_limit,
        ),
        cost_estimate=pl.CostEstimate(
            flops=3 * numel,
            transcendentals=0,
            bytes_accessed=2 * numel * itemsize + n_outer * B * 4,
        ),
    )(x2, xh2)

    row_sums = jnp.sum(partials, axis=0)[:, 0]     # (B,)

    if not anomaly_score:
        # loss.mean() == (sum over all elements of d^2) / numel
        return jnp.sum(row_sums) / numel

    # per-sample mean over dims [1, 2, 3]
    scale = (2.0 / (numel * F)) if use_abs else (1.0 / F)
    return row_sums * scale


# ---------------------------------------------------------------------------
# Self-test
# ---------------------------------------------------------------------------

def _check(net_in, x_hat):
    net_out = {"x_hat": x_hat}

    loss = jax.block_until_ready(ae_loss(net_in, net_out))
    score = jax.block_until_ready(ae_loss(net_in, net_out, anomaly_score=True))
    score_kd = jax.block_until_ready(
        ae_loss(net_in, net_out, anomaly_score=True, keepdim=True))
    gscore = jax.block_until_ready(
        ae_loss(net_in, net_out, anomaly_score=True, grad_score=True))
    gscore_kd = jax.block_until_ready(
        ae_loss(net_in, net_out, anomaly_score=True, grad_score=True, keepdim=True))

    # Pure-JAX reference
    d2 = (net_in - x_hat) ** 2
    ref_loss = d2.mean()
    ref_score = d2.mean(axis=(1, 2, 3))
    ref_kd = d2.mean(axis=1, keepdims=True)
    grad_ref = jnp.abs(jax.grad(lambda x: jnp.mean((x - x_hat) ** 2))(net_in))
    ref_g = grad_ref.mean(axis=(1, 2, 3))
    ref_g_kd = grad_ref.mean(axis=1, keepdims=True)

    assert jnp.allclose(loss, ref_loss, atol=1e-5, rtol=1e-5)
    assert jnp.allclose(score, ref_score, atol=1e-5, rtol=1e-5)
    assert jnp.allclose(score_kd, ref_kd, atol=1e-5, rtol=1e-5)
    assert jnp.allclose(gscore, ref_g, atol=1e-6, rtol=1e-5)
    assert jnp.allclose(gscore_kd, ref_g_kd, atol=1e-6, rtol=1e-5)


if __name__ == "__main__":
    key = jax.random.PRNGKey(0)
    k1, k2, k3, k4 = jax.random.split(key, 4)

    # Small shape consistent with the module (B=2, C=4, 16x16).
    _check(jax.random.normal(k1, (2, 4, 16, 16), dtype=jnp.float32),
           jax.random.normal(k2, (2, 4, 16, 16), dtype=jnp.float32))

    # Slightly larger shape: B=8 exercises the "split F into an outer parallel
    # axis" path (n_outer=2 partial sums combined in the epilogue).
    _check(jax.random.normal(k3, (8, 3, 32, 32), dtype=jnp.float32),
           jax.random.normal(k4, (8, 3, 32, 32), dtype=jnp.float32))

    print("KERNEL_OK")
</pallas_src>

<mosaic_0001>
module attributes {stable_mosaic.version = 11 : i64} {
  func.func @_row_sum_kernel(%arg0: i32, %arg1: i32, %arg2: i32, %arg3: memref<2x512xf32, #tpu.memory_space<vmem>>, %arg4: memref<2x512xf32, #tpu.memory_space<vmem>>, %arg5: memref<1x2x1xf32, #tpu.memory_space<vmem>>) attributes {dimension_semantics = [#tpu.dimension_semantics<parallel>, #tpu.dimension_semantics<parallel>, #tpu.dimension_semantics<arbitrary>], iteration_bounds = array<i64: 1, 2, 1>, scalar_prefetch = 0 : i64, scratch_operands = 0 : i64, tpu.core_type = #tpu.core_type<tc>, window_params = [{transform_indices = @transform_0, window_bounds = array<i64: 2, 512>}, {transform_indices = @transform_1, window_bounds = array<i64: 2, 512>}, {transform_indices = @transform_2, window_bounds = array<i64: 1, 2, 1>}]} {
    %c0 = arith.constant 0 : index
    %c0_0 = arith.constant 0 : index
    %0 = vector.load %arg3[%c0, %c0_0] : memref<2x512xf32, #tpu.memory_space<vmem>>, vector<2x512xf32>
    %c0_1 = arith.constant 0 : index
    %c0_2 = arith.constant 0 : index
    %1 = vector.load %arg4[%c0_1, %c0_2] : memref<2x512xf32, #tpu.memory_space<vmem>>, vector<2x512xf32>
    %2 = arith.subf %0, %1 : vector<2x512xf32>
    %3 = arith.mulf %2, %2 : vector<2x512xf32>
    %cst = arith.constant dense<0.000000e+00> : vector<2xf32>
    %4 = vector.multi_reduction <add>, %3, %cst [1] : vector<2x512xf32> to vector<2xf32>
    %5 = vector.shape_cast %4 : vector<2xf32> to vector<2x1xf32>
    %6 = vector.shape_cast %5 : vector<2x1xf32> to vector<1x2x1xf32>
    %c0_i32 = arith.constant 0 : i32
    %7 = arith.cmpi eq, %arg2, %c0_i32 : i32
    %8 = arith.extui %7 : i1 to i32
    %c0_i32_3 = arith.constant 0 : i32
    %9 = arith.cmpi ne, %8, %c0_i32_3 : i32
    scf.if %9 {
      %c0_6 = arith.constant 0 : index
      %c0_7 = arith.constant 0 : index
      %c0_8 = arith.constant 0 : index
      %13 = vector.load %arg5[%c0_6, %c0_7, %c0_8] : memref<1x2x1xf32, #tpu.memory_space<vmem>>, vector<1x2x1xf32>
      tpu.vector_store %arg5[%c0_6, %c0_7, %c0_8], %6 {strides = array<i32>} : memref<1x2x1xf32, #tpu.memory_space<vmem>>, vector<1x2x1xf32>,
    } else {
    }
    %c0_i32_4 = arith.constant 0 : i32
    %10 = arith.cmpi ne, %arg2, %c0_i32_4 : i32
    %11 = arith.extui %10 : i1 to i32
    %c0_i32_5 = arith.constant 0 : i32
    %12 = arith.cmpi ne, %11, %c0_i32_5 : i32
    scf.if %12 {
      %c0_6 = arith.constant 0 : index
      %c0_7 = arith.constant 0 : index
      %c0_8 = arith.constant 0 : index
      %13 = vector.load %arg5[%c0_6, %c0_7, %c0_8] : memref<1x2x1xf32, #tpu.memory_space<vmem>>, vector<1x2x1xf32>
      %14 = arith.addf %13, %6 : vector<1x2x1xf32>
      %c0_9 = arith.constant 0 : index
      %c0_10 = arith.constant 0 : index
      %c0_11 = arith.constant 0 : index
      %15 = vector.load %arg5[%c0_9, %c0_10, %c0_11] : memref<1x2x1xf32, #tpu.memory_space<vmem>>, vector<1x2x1xf32>
      tpu.vector_store %arg5[%c0_9, %c0_10, %c0_11], %14 {strides = array<i32>} : memref<1x2x1xf32, #tpu.memory_space<vmem>>, vector<1x2x1xf32>,
    } else {
    }
    return
  }
  func.func @transform_0(%arg0: i32, %arg1: i32, %arg2: i32) -> (i32, i32) {
    %c1_i32 = arith.constant 1 : i32
    %0 = arith.muli %arg1, %c1_i32 : i32
    %1 = arith.addi %0, %arg2 : i32
    %c0_i32 = arith.constant 0 : i32
    return %arg0, %1 : i32, i32
  }
  func.func @transform_1(%arg0: i32, %arg1: i32, %arg2: i32) -> (i32, i32) {
    %c1_i32 = arith.constant 1 : i32
    %0 = arith.muli %arg1, %c1_i32 : i32
    %1 = arith.addi %0, %arg2 : i32
    %c0_i32 = arith.constant 0 : i32
    return %arg0, %1 : i32, i32
  }
  func.func @transform_2(%arg0: i32, %arg1: i32, %arg2: i32) -> (i32, i32, i32) {
    %c0_i32 = arith.constant 0 : i32
    %c0_i32_0 = arith.constant 0 : i32
    return %arg1, %arg0, %c0_i32 : i32, i32, i32
  }
}

</mosaic_0001>

<llo_original>
// kernel: tpu_custom_call.1
$region0: #{tpu_custom_call.1}
  #allocation0 [shape = 'u32[]', space=smem, size = 0x4, offset = 0x4, fixed_abs, tag = 'smem constant byte address 0x4 - core index']
  #allocation1 [shape = 'u32[144,128]{1,0:T(1,128)}', space=vmem, size = 0x12000, scoped, tag = 'internal scratch']
  %s0 = inlined_call_operand.hbm [shape: f32[2,1024], index: 0, kind: input, shape index: {}]
  %s1 = inlined_call_operand.hbm [shape: f32[2,1024], index: 1, kind: input, shape index: {}]
  %s2 = inlined_call_operand.vmem [shape: f32[2,2,1], index: 2, kind: output, shape index: {}]
  %s3 = sld [smem:[#allocation0]]
  $region57: #{tpu_custom_call.1} parent=0
    _
  %s5 = ssub.s32 1, %s3
  %s6 = scalar_select 0, %s5, %s3
  $region1: #{tpu_custom_call.1} parent=0
    #allocation2 [shape = 'u8[8192]{0}', space=vmem, size = 0x2000, scoped, tag = 'input window, operand 0']
    #allocation3 [shape = 's32[2]{0}', space=sflag, size = 0x8, scoped, tag = 'scoped memory for tpu_custom_call.1']
    #allocation4 [shape = 'u8[8192]{0}', space=vmem, size = 0x2000, scoped, tag = 'input window, operand 1']
    #allocation5 [shape = 's32[2]{0}', space=sflag, size = 0x8, scoped, tag = 'scoped memory for tpu_custom_call.1']
    %7 = vsyncpa [#allocation3], 0
    %s8 = scalar_lea.sflag [#allocation3], 1
    %9 = vsyncpa %s8, 0
    %10 = vsyncpa [#allocation5], 0
    %s11 = scalar_lea.sflag [#allocation5], 1
    %12 = vsyncpa %s11, 0
    loop: start=0, step=1, limit=4
    $region2: #{tpu_custom_call.1} parent=1 // loop_pre_header
      _
    $region3: #{tpu_custom_call.1} parent=1 // loop_header
      %s14 = sphi 0, %s18
      %p15 = scmp.ge.s32.totalorder %s14, 4
      %s21 = sphi 0, %s40
      %s22 = sphi 0, %s36
      %s23 = sphi 0, %s32
      %s24 = sphi 0, %s21
      %s25 = sphi 0, %s22
      %s26 = sphi 0, %s23
      %s27 = sphi 0, %s24
      %s28 = sphi 0, %s25
      %s29 = sphi 0, %s26
      %s47 = sphi 0, %s49
      %s50 = sphi 0, %s47
      %s51 = sphi 0, %s50
      %s67 = sphi 0, %s51
      %s77 = sphi 0, %s79
      %s80 = sphi 0, %s77
      %s81 = sphi 0, %s80
      %s97 = sphi 0, %s81
      %s105 = sphi 0, %s107
      %s108 = sphi 0, %s105
      %s109 = sphi 0, %s108
      %s125 = sphi 0, %s109
    $region4: #{tpu_custom_call.1} parent=1 // loop_header_branch
      %17 = sbr.rel (%p15) target = $region8
    $region5: #{tpu_custom_call.1} parent=1 // loop_body
      %s19 = ssub.s32 %s14, 1
      %s20 = ssub.s32 %s14, 2
      %s30 = sadd.s32 1, %s23
      %p31 = scmp.ge.s32.totalorder %s30, 1
      %s32 = scalar_select %p31, 0, %s30
      %s33 = sadd.s32 1, %s22
      %s34 = scalar_select %p31, %s33, %s22
      %p35 = scmp.ge.s32.totalorder %s34, 2
      %s36 = scalar_select %p35, 0, %s34
      %s37 = sadd.s32 1, %s21
      %s38 = scalar_select %p35, %s37, %s21
      %p39 = scmp.ge.s32.totalorder %s38, 1
      %s40 = scalar_select %p39, 0, %s38
      %s41 = sadd.s32 %s22, %s23
      %s42 = sadd.s32 %s36, %s32
      %s43 = ssub.s32 %s21, %s40
      %s44 = ssub.s32 %s41, %s42
      %s45 = sor.u32 %s43, %s44
      %p46 = scmp.eq.s32.totalorder %s45, 0
      %s48 = sadd.s32 %s47, 1
      %s49 = scalar_select %p46, %s47, %s48
      %p52 = pneg %p46
      %p53 = scmp.eq.s32.totalorder %s14, 1
      %p54 = por %p52, %p53
      %p55 = scmp.ne.s32.totalorder %s47, %s50
      %p56 = scmp.eq.s32.totalorder %s14, 0
      %p57 = por %p55, %p56
      %p58 = scmp.ne.s32.totalorder %s47, %s50
      %p59 = scmp.eq.s32.totalorder %s19, 1
      %p60 = por %p58, %p59
      %p61 = scmp.ne.s32.totalorder %s50, %s51
      %p62 = scmp.eq.s32.totalorder %s19, 0
      %p63 = por %p61, %p62
      %p64 = scmp.ne.s32.totalorder %s50, %s51
      %p65 = scmp.eq.s32.totalorder %s20, 1
      %p66 = por %p64, %p65
      %p68 = scmp.ne.s32.totalorder %s51, %s67
      %p69 = scmp.eq.s32.totalorder %s20, 0
      %p70 = por %p68, %p69
      %s71 = sadd.s32 %s22, %s23
      %s72 = sadd.s32 %s36, %s32
      %s73 = ssub.s32 %s21, %s40
      %s74 = ssub.s32 %s71, %s72
      %s75 = sor.u32 %s73, %s74
      %p76 = scmp.eq.s32.totalorder %s75, 0
      %s78 = sadd.s32 %s77, 1
      %s79 = scalar_select %p76, %s77, %s78
      %p82 = pneg %p76
      %p83 = scmp.eq.s32.totalorder %s14, 1
      %p84 = por %p82, %p83
      %p85 = scmp.ne.s32.totalorder %s77, %s80
      %p86 = scmp.eq.s32.totalorder %s14, 0
      %p87 = por %p85, %p86
      %p88 = scmp.ne.s32.totalorder %s77, %s80
      %p89 = scmp.eq.s32.totalorder %s19, 1
      %p90 = por %p88, %p89
      %p91 = scmp.ne.s32.totalorder %s80, %s81
      %p92 = scmp.eq.s32.totalorder %s19, 0
      %p93 = por %p91, %p92
      %p94 = scmp.ne.s32.totalorder %s80, %s81
      %p95 = scmp.eq.s32.totalorder %s20, 1
      %p96 = por %p94, %p95
      %p98 = scmp.ne.s32.totalorder %s81, %s97
      %p99 = scmp.eq.s32.totalorder %s20, 0
      %p100 = por %p98, %p99
      %s101 = ssub.s32 %s22, %s36
      %s102 = ssub.s32 %s21, %s40
      %s103 = sor.u32 %s101, %s102
      %p104 = scmp.eq.s32.totalorder %s103, 0
      %s106 = sadd.s32 %s105, 1
      %s107 = scalar_select %p104, %s105, %s106
      %p110 = pneg %p104
      %p111 = scmp.eq.s32.totalorder %s14, 1
      %p112 = por %p110, %p111
      %p113 = scmp.ne.s32.totalorder %s105, %s108
      %p114 = scmp.eq.s32.totalorder %s14, 0
      %p115 = por %p113, %p114
      %p116 = scmp.ne.s32.totalorder %s105, %s108
      %p117 = scmp.eq.s32.totalorder %s19, 1
      %p118 = por %p116, %p117
      %p119 = scmp.ne.s32.totalorder %s108, %s109
      %p120 = scmp.eq.s32.totalorder %s19, 0
      %p121 = por %p119, %p120
      %p122 = scmp.ne.s32.totalorder %s108, %s109
      %p123 = scmp.eq.s32.totalorder %s20, 1
      %p124 = por %p122, %p123
      %p126 = scmp.ne.s32.totalorder %s109, %s125
      %p127 = scmp.eq.s32.totalorder %s20, 0
      %p128 = por %p126, %p127
      %p129 = scmp.le.s32.totalorder 1, %s14
      %p130 = scmp.lt.s32.totalorder %s14, 3
      %p131 = pnand %p129, %p130
      %p132 = pneg %p131
      // Predicated region
      $region9: #{tpu_custom_call.1} parent=5 // pred_check
        _
      $region10: #{tpu_custom_call.1} parent=5 // pred_check_branch
        %134 = sbr.rel (%p131) target = $region12
      $region11: #{tpu_custom_call.1} parent=5 // pred_region
        %s135 = ssub.s32 %s14, 1
      $region12: #{tpu_custom_call.1} parent=5 // pred_fallthru
        _
      %p136 = scmp.lt.s32.totalorder %s14, 2
      // Predicated region
      $region13: #{tpu_custom_call.1} parent=5 // pred_check
        %p137 = pneg %p136
      $region14: #{tpu_custom_call.1} parent=5 // pred_check_branch
        %139 = sbr.rel (%p137) target = $region16
      $region15: #{tpu_custom_call.1} parent=5 // pred_region
        // Predicated region
        $region17: #{tpu_custom_call.1} parent=15 // pred_check
          %p140 = pneg %p57
        $region18: #{tpu_custom_call.1} parent=15 // pred_check_branch
          %142 = sbr.rel (%p140) target = $region20
        $region19: #{tpu_custom_call.1} parent=15 // pred_region
          %s143 = sand.u32 %s47, 1
          %s144 = scalar_lea.sflag [#allocation3], %s143
          %s145 = sand.u32 %s47, 1
          %s146 = smul.addr %s145, 8
          %s147 = scalar_lea.vmem [#allocation2], %s146
          %s148 = sadd.s32 %s22, %s23
          %s149 = smul.u32 4, %s148
          %s151 = ssub.s32 128, 128
          %152 = vsyncadd %s144, %s151
          %s153 = smul.addr %s21, 8
          %s154 = sadd.s32 %s149, %s153
          %s155 = smul.addr %s154, 32
          %s156 = scalar_lea.hbm %s0, %s155
          %s158 = sshll.u32 %s147, 4
          %s159 = int_to_ptr.vmem [resolvable:$true] %s158
          %161 = dma.hbm_to_vmem [thread:$0]  %s156, 128, %s159, %s144
        $region20: #{tpu_custom_call.1} parent=15 // pred_fallthru
          _
        // Predicated region
        $region21: #{tpu_custom_call.1} parent=15 // pred_check
          %p162 = pneg %p87
        $region22: #{tpu_custom_call.1} parent=15 // pred_check_branch
          %164 = sbr.rel (%p162) target = $region24
        $region23: #{tpu_custom_call.1} parent=15 // pred_region
          %s165 = sand.u32 %s77, 1
          %s166 = scalar_lea.sflag [#allocation5], %s165
          %s167 = sand.u32 %s77, 1
          %s168 = smul.addr %s167, 8
          %s169 = scalar_lea.vmem [#allocation4], %s168
          %s170 = sadd.s32 %s22, %s23
          %s171 = smul.u32 4, %s170
          %s173 = ssub.s32 128, 128
          %174 = vsyncadd %s166, %s173
          %s175 = smul.addr %s21, 8
          %s176 = sadd.s32 %s171, %s175
          %s177 = smul.addr %s176, 32
          %s178 = scalar_lea.hbm %s1, %s177
          %s180 = sshll.u32 %s169, 4
          %s181 = int_to_ptr.vmem [resolvable:$true] %s180
          %183 = dma.hbm_to_vmem [thread:$0]  %s178, 128, %s181, %s166
        $region24: #{tpu_custom_call.1} parent=15 // pred_fallthru
          _
      $region16: #{tpu_custom_call.1} parent=5 // pred_fallthru
        _
      %p184 = scmp.le.s32.totalorder 1, %s14
      %p185 = scmp.lt.s32.totalorder %s14, 3
      %p186 = pnand %p184, %p185
      %p187 = pneg %p186
      // Predicated region
      $region25: #{tpu_custom_call.1} parent=5 // pred_check
        _
      $region26: #{tpu_custom_call.1} parent=5 // pred_check_branch
        %189 = sbr.rel (%p186) target = $region28
      $region27: #{tpu_custom_call.1} parent=5 // pred_region
        %s190 = ssub.s32 %s14, 1
        %s191 = sand.u32 %s50, 1
        %s192 = scalar_lea.sflag [#allocation3], %s191
        %s193 = sand.u32 %s50, 1
        %s194 = smul.addr %s193, 8
        %s195 = scalar_lea.vmem [#allocation2], %s194
        // Predicated region
        $region29: #{tpu_custom_call.1} parent=27 // pred_check
          %p196 = pneg %p63
        $region30: #{tpu_custom_call.1} parent=27 // pred_check_branch
          %198 = sbr.rel (%p196) target = $region32
        $region31: #{tpu_custom_call.1} parent=27 // pred_region
          %199 = dma.done %s192, 128
        $region32: #{tpu_custom_call.1} parent=27 // pred_fallthru
          _
        %s200 = sand.u32 %s80, 1
        %s201 = scalar_lea.sflag [#allocation5], %s200
        %s202 = sand.u32 %s80, 1
        %s203 = smul.addr %s202, 8
        %s204 = scalar_lea.vmem [#allocation4], %s203
        // Predicated region
        $region33: #{tpu_custom_call.1} parent=27 // pred_check
          %p205 = pneg %p93
        $region34: #{tpu_custom_call.1} parent=27 // pred_check_branch
          %207 = sbr.rel (%p205) target = $region36
        $region35: #{tpu_custom_call.1} parent=27 // pred_region
          %208 = dma.done %s201, 128
        $region36: #{tpu_custom_call.1} parent=27 // pred_fallthru
          _
        %s209 = sand.u32 %s50, 1
        %s210 = scalar_lea.sflag [#allocation3], %s209
        %s211 = sand.u32 %s50, 1
        %s212 = smul.addr %s211, 8
        %s213 = scalar_lea.vmem [#allocation2], %s212
        %p214 = pneg %p63
        %p215 = pneg %p60
        %s216 = sand.u32 %s80, 1
        %s217 = scalar_lea.sflag [#allocation5], %s216
        %s218 = sand.u32 %s80, 1
        %s219 = smul.addr %s218, 8
        %s220 = scalar_lea.vmem [#allocation4], %s219
        %p221 = pneg %p93
        %p222 = pneg %p90
        %p223 = pneg %p121
        %p224 = pneg %p118
        %p225 = scmp.lt.s32.totalorder %s25, 1
        %s226 = scalar_select %p225, %s25, 1
        %p227 = scmp.lt.s32.totalorder %s24, 0
        %s228 = scalar_select %p227, %s24, 0
        %s229 = sadd.s32 %s228, %s226
        %s230 = smul.addr %s229, 2
        %s231 = scalar_lea.vmem %s2, %s230
        %s232 = sadd.s32 %s25, %s26
        %s233 = smul.u32 4, %s232
        %s234 = sadd.s32 %s25, %s26
        %s235 = smul.u32 4, %s234
        %p236 = scmp.lt.s32.totalorder %s25, 1
        %s237 = scalar_select %p236, %s25, 1
        %p238 = scmp.lt.s32.totalorder %s24, 0
        %s239 = scalar_select %p238, %s24, 0
        %s240 = sadd.s32 %s239, %s237
        %s241 = smul.addr %s240, 2
        %s242 = scalar_lea.vmem %s2, %s241
        %v243 = vld [vmem:[%s195] sm:$0xff]
        %v244 = vld [vmem:[%s204] sm:$0xff]
        %v245 = vsub.f32 %v243, %v244
        %v246 = vmul.f32 %v245, %v245
        %v248 = vcombine.high %v246, %v246
        %v250 = vunpack.c.l.s4 1983009808
        %v251 = vunpack.c.0.s8 %v250
        %v252 = vlaneseq
        %v253 = vshrl.u32 %v252, 7
        %v254 = vsub.s32 %v251, %v253
        %v255 = vrot.slane %v246, %v254
        %v257 = vunpack.c.l.s4 1983009808
        %v258 = vunpack.c.0.s8 %v257
        %v259 = vlaneseq
        %v260 = vshrl.u32 %v259, 7
        %v261 = vsub.s32 %v258, %v260
        %v262 = vrot.slane %v248, %v261
        %v263 = vcombine.high %v255, %v255
        %v264 = vcombine.high %v262, %v262
        %vm269 = vcmask 1041408
        %v270 = vsel %vm269, %v255, 0.0
        %v271 = vsel %vm269, %v263, 0.0
        %v272 = vadd.f32 %v270, %v271
        %v273 = vsel %vm269, %v262, 0.0
        %v274 = vadd.f32 %v272, %v273
        %v275 = vsel %vm269, %v264, 0.0
        %v276 = vadd.f32 %v274, %v275
        %277 = vadd.xlane.f32.xlu0 %v276
        %v278 = vpop.xlane.xlu0 %277
        %p279 = scmp.eq.s32.totalorder %s26, 0
        // Predicated region
        $region37: #{tpu_custom_call.1} parent=27 // pred_check
          %p280 = pneg %p279
        $region38: #{tpu_custom_call.1} parent=27 // pred_check_branch
          %282 = sbr.rel (%p280) target = $region40
        $region39: #{tpu_custom_call.1} parent=27 // pred_region
          %vm283 = vcmask 1024
          %284 = vst.msk [vmem:[%s242] sm:$0x3] %vm283, %v278
        $region40: #{tpu_custom_call.1} parent=27 // pred_fallthru
          _
        %p285 = scmp.ne.s32.totalorder %s26, 0
        // Predicated region
        $region41: #{tpu_custom_call.1} parent=27 // pred_check
          %p286 = pneg %p285
        $region42: #{tpu_custom_call.1} parent=27 // pred_check_branch
          %288 = sbr.rel (%p286) target = $region44
        $region43: #{tpu_custom_call.1} parent=27 // pred_region
          %v289 = vld [vmem:[%s242] sm:$0x3]
          %v290 = vadd.f32 %v289, %v278
          %vm291 = vcmask 1024
          %292 = vst.msk [vmem:[%s242] sm:$0x3] %vm291, %v290
        $region44: #{tpu_custom_call.1} parent=27 // pred_fallthru
          _
        %p293 = scmp.lt.s32.totalorder %s25, 1
        %s294 = scalar_select %p293, %s25, 1
        %p295 = scmp.lt.s32.totalorder %s24, 0
        %s296 = scalar_select %p295, %s24, 0
        %s297 = sadd.s32 %s296, %s294
        %s298 = smul.addr %s297, 2
        %s299 = scalar_lea.vmem %s2, %s298
        // Predicated region
        $region45: #{tpu_custom_call.1} parent=27 // pred_check
          %p300 = pneg %p118
        $region46: #{tpu_custom_call.1} parent=27 // pred_check_branch
          %302 = sbr.rel (%p300) target = $region48
        $region47: #{tpu_custom_call.1} parent=27 // pred_region
          _
        $region48: #{tpu_custom_call.1} parent=27 // pred_fallthru
          _
      $region28: #{tpu_custom_call.1} parent=5 // pred_fallthru
        _
      %p303 = scmp.le.s32.totalorder 2, %s14
      // Predicated region
      $region49: #{tpu_custom_call.1} parent=5 // pred_check
        %p304 = pneg %p303
      $region50: #{tpu_custom_call.1} parent=5 // pred_check_branch
        %306 = sbr.rel (%p304) target = $region52
      $region51: #{tpu_custom_call.1} parent=5 // pred_region
        %s307 = ssub.s32 %s14, 2
        // Predicated region
        $region53: #{tpu_custom_call.1} parent=51 // pred_check
          %p308 = pneg %p124
        $region54: #{tpu_custom_call.1} parent=51 // pred_check_branch
          %310 = sbr.rel (%p308) target = $region56
        $region55: #{tpu_custom_call.1} parent=51 // pred_region
          %p311 = scmp.lt.s32.totalorder %s28, 1
          %s312 = scalar_select %p311, %s28, 1
          %p313 = scmp.lt.s32.totalorder %s27, 0
          %s314 = scalar_select %p313, %s27, 0
          %s315 = sadd.s32 %s314, %s312
          %s316 = smul.addr %s315, 2
          %s317 = scalar_lea.vmem %s2, %s316
        $region56: #{tpu_custom_call.1} parent=51 // pred_fallthru
          _
      $region52: #{tpu_custom_call.1} parent=5 // pred_fallthru
        _
    $region6: #{tpu_custom_call.1} parent=1 // loop_footer
      %s18 = sadd.s32 1, %s14
    $region7: #{tpu_custom_call.1} parent=1 // loop_footer_branch
      %13 = sbr.rel target = $region3
    $region8: #{tpu_custom_call.1} parent=1 // loop_exit
      _
    %318 = vsyncpa [#allocation3], 1
    %s319 = scalar_lea.sflag [#allocation3], 1
    %320 = vsyncpa %s319, 1
    %321 = vsyncpa [#allocation5], 1
    %s322 = scalar_lea.sflag [#allocation5], 1
    %323 = vsyncpa %s322, 1

</llo_original>
